<compile_context>
chip_gen: v7x
topology: tpu7x:2x2x1
jax: 0.10.0
libtpu: 0.0.40
codegen_flags: <defaults>
</compile_context>

<pallas_src>
import functools
import math

import jax
import jax.numpy as jnp
from jax import lax
from jax.experimental import pallas as pl
from jax.experimental.pallas import tpu as pltpu


# ------------------------------ helpers -------------------------------------

def _tile(dim, target, base):
    """Largest multiple of `base` that divides `dim` and is <= target, else dim."""
    if dim <= target:
        return dim
    t = (target // base) * base
    while t >= base:
        if dim % t == 0:
            return t
        t -= base
    return dim


def _cparams(dims, blocks=(), scratch_bytes=0):
    """CompilerParams with dimension_semantics and a vmem limit sized from the
    double-buffered blocks + scratch, capped at 64 MiB (fits v7x physical)."""
    est = int(scratch_bytes)
    for shape, dtype in blocks:
        est += 2 * math.prod(int(s) for s in shape) * jnp.dtype(dtype).itemsize
    limit = int(min(64 * 1024 * 1024, max(32 * 1024 * 1024, 4 * est)))
    return pltpu.CompilerParams(dimension_semantics=dims, vmem_limit_bytes=limit)


# ----------------------------- Pallas kernels -------------------------------

def _matmul_kernel(x_ref, w_ref, *rest, use_bias, use_res, relu):
    """M/N/K-tiled matmul, f32 VMEM accumulator, bias/relu/residual in finalize."""
    rest = list(rest)
    b_ref = rest.pop(0) if use_bias else None
    r_ref = rest.pop(0) if use_res else None
    o_ref, acc_ref = rest

    @pl.when(pl.program_id(2) == 0)
    def _():
        acc_ref[...] = jnp.zeros_like(acc_ref)

    x = x_ref[...]
    if x.dtype != jnp.bfloat16:
        x = x.astype(jnp.bfloat16)
    acc_ref[...] += jnp.dot(x, w_ref[...], preferred_element_type=jnp.float32)

    @pl.when(pl.program_id(2) == pl.num_programs(2) - 1)
    def _():
        y = acc_ref[...]
        if use_bias:
            y = y + b_ref[...]
        if relu:
            y = jnp.maximum(y, 0.0)
        if use_res:
            y = y + r_ref[...].astype(jnp.float32)
        o_ref[...] = y.astype(o_ref.dtype)


def matmul(x, w, b=None, residual=None, relu=False, out_dtype=jnp.bfloat16):
    """x: (M,K), w: (K,N) bf16, b: (1,N) f32, residual: (M,N) bf16 -> (M,N)."""
    M, K = x.shape
    N = w.shape[1]
    tm = _tile(M, 512, 8)
    tn = _tile(N, 1024, 128)
    tk = _tile(K, 512, 128)
    use_bias = b is not None
    use_res = residual is not None

    in_specs = [pl.BlockSpec((tm, tk), lambda i, j, k: (i, k)),
                pl.BlockSpec((tk, tn), lambda i, j, k: (k, j))]
    args = [x, w]
    blocks = [((tm, tk), x.dtype), ((tk, tn), w.dtype), ((tm, tn), out_dtype)]
    if use_bias:
        in_specs.append(pl.BlockSpec((1, tn), lambda i, j, k: (0, j)))
        args.append(b)
        blocks.append(((1, tn), b.dtype))
    if use_res:
        in_specs.append(pl.BlockSpec((tm, tn), lambda i, j, k: (i, j)))
        args.append(residual)
        blocks.append(((tm, tn), residual.dtype))

    return pl.pallas_call(
        functools.partial(_matmul_kernel, use_bias=use_bias, use_res=use_res,
                          relu=relu),
        out_shape=jax.ShapeDtypeStruct((M, N), out_dtype),
        grid=(M // tm, N // tn, K // tk),
        in_specs=in_specs,
        out_specs=pl.BlockSpec((tm, tn), lambda i, j, k: (i, j)),
        scratch_shapes=[pltpu.VMEM((tm, tn), jnp.float32)],
        compiler_params=_cparams(("parallel", "parallel", "arbitrary"),
                                 blocks, scratch_bytes=tm * tn * 4),
    )(*args)


def _proj_split_kernel(x_ref, *rest, use_ln, n_out):
    """(optional LN(x)) @ W + bias, result split column-wise to n_out outputs."""
    rest = list(rest)
    if use_ln:
        g_ref = rest.pop(0)
        bl_ref = rest.pop(0)
    w_ref = rest.pop(0)
    b_ref = rest.pop(0)
    outs = rest   # n_out output refs

    x = x_ref[...]
    if use_ln:
        xf = x.astype(jnp.float32)
        mu = jnp.mean(xf, axis=-1, keepdims=True)
        var = jnp.mean(jnp.square(xf - mu), axis=-1, keepdims=True)
        xn = (xf - mu) * lax.rsqrt(var + 1e-6) * g_ref[...] + bl_ref[...]
        xin = xn.astype(jnp.bfloat16)
    else:
        xin = x if x.dtype == jnp.bfloat16 else x.astype(jnp.bfloat16)

    y = jnp.dot(xin, w_ref[...], preferred_element_type=jnp.float32) + b_ref[...]
    n = y.shape[1] // n_out
    for t, o_ref in enumerate(outs):
        o_ref[...] = y[:, t * n:(t + 1) * n].astype(o_ref.dtype)


def proj_split(x, w, b, n_out, ln=None):
    """Fused projection; the (M, n_out*D) result is split in-VMEM, so the
    wrapper never slices the fused activation in HBM."""
    M, K = x.shape
    Ntot = w.shape[1]
    N = Ntot // n_out
    tm = _tile(M, 512, 8)
    use_ln = ln is not None

    in_specs = [pl.BlockSpec((tm, K), lambda i: (i, 0))]
    args = [x]
    if use_ln:
        in_specs += [pl.BlockSpec((1, K), lambda i: (0, 0)),
                     pl.BlockSpec((1, K), lambda i: (0, 0))]
        args += [ln[0], ln[1]]
    in_specs += [pl.BlockSpec((K, Ntot), lambda i: (0, 0)),
                 pl.BlockSpec((1, Ntot), lambda i: (0, 0))]
    args += [w, b]

    out_shapes = tuple(jax.ShapeDtypeStruct((M, N), jnp.bfloat16)
                       for _ in range(n_out))
    out_specs = tuple(pl.BlockSpec((tm, N), lambda i: (i, 0))
                      for _ in range(n_out))
    blocks = ([((tm, K), x.dtype), ((K, Ntot), w.dtype), ((1, Ntot), b.dtype)]
              + [((tm, N), jnp.bfloat16)] * n_out)

    return pl.pallas_call(
        functools.partial(_proj_split_kernel, use_ln=use_ln, n_out=n_out),
        out_shape=out_shapes,
        grid=(M // tm,),
        in_specs=in_specs,
        out_specs=out_specs,
        compiler_params=_cparams(("parallel",), blocks),
    )(*args)


def _ln_matmul_kernel(x_ref, g_ref, bl_ref, w_ref, o_ref):
    xf = x_ref[...].astype(jnp.float32)
    mu = jnp.mean(xf, axis=-1, keepdims=True)
    var = jnp.mean(jnp.square(xf - mu), axis=-1, keepdims=True)
    xn = (xf - mu) * lax.rsqrt(var + 1e-6) * g_ref[...] + bl_ref[...]
    o_ref[...] = jnp.dot(xn.astype(jnp.bfloat16), w_ref[...],
                         preferred_element_type=jnp.float32).astype(o_ref.dtype)


def ln_matmul(x, g, bl, w, out_dtype=jnp.float32):
    """Final LayerNorm fused with the bias-free output projection (N tiled)."""
    M, K = x.shape
    N = w.shape[1]
    tm = _tile(M, 512, 8)
    tn = _tile(N, 1024, 128)
    blocks = [((tm, K), x.dtype), ((K, tn), w.dtype), ((tm, tn), out_dtype)]
    return pl.pallas_call(
        _ln_matmul_kernel,
        out_shape=jax.ShapeDtypeStruct((M, N), out_dtype),
        grid=(M // tm, N // tn),
        in_specs=[pl.BlockSpec((tm, K), lambda i, j: (i, 0)),
                  pl.BlockSpec((1, K), lambda i, j: (0, 0)),
                  pl.BlockSpec((1, K), lambda i, j: (0, 0)),
                  pl.BlockSpec((K, tn), lambda i, j: (0, j))],
        out_specs=pl.BlockSpec((tm, tn), lambda i, j: (i, j)),
        compiler_params=_cparams(("parallel", "parallel"), blocks),
    )(x, g, bl, w)


def _ffn_kernel(x_ref, g_ref, bl_ref, w1_ref, b1_ref, w2_ref, b2_ref, o_ref,
                xn_sc, acc_sc):
    """Fused LN -> W1 + ReLU -> W2 + residual, tiled over the FF axis."""
    f = pl.program_id(1)

    @pl.when(f == 0)
    def _():
        xf = x_ref[...].astype(jnp.float32)
        mu = jnp.mean(xf, axis=-1, keepdims=True)
        var = jnp.mean(jnp.square(xf - mu), axis=-1, keepdims=True)
        xn = (xf - mu) * lax.rsqrt(var + 1e-6) * g_ref[...] + bl_ref[...]
        xn_sc[...] = xn.astype(jnp.bfloat16)
        acc_sc[...] = jnp.zeros_like(acc_sc)

    h = jnp.dot(xn_sc[...], w1_ref[...],
                preferred_element_type=jnp.float32) + b1_ref[...]
    h = jnp.maximum(h, 0.0)
    acc_sc[...] += jnp.dot(h.astype(jnp.bfloat16), w2_ref[...],
                           preferred_element_type=jnp.float32)

    @pl.when(f == pl.num_programs(1) - 1)
    def _():
        y = acc_sc[...] + b2_ref[...] + x_ref[...].astype(jnp.float32)
        o_ref[...] = y.astype(o_ref.dtype)


def ffn_fused(x, g, bl, w1, b1, w2, b2):
    M, D = x.shape
    F = w1.shape[1]
    tm = _tile(M, 256, 8)
    tf = _tile(F, 512, 128)
    blocks = [((tm, D), x.dtype), ((D, tf), w1.dtype), ((1, tf), b1.dtype),
              ((tf, D), w2.dtype), ((1, D), b2.dtype), ((tm, D), jnp.bfloat16)]
    return pl.pallas_call(
        _ffn_kernel,
        out_shape=jax.ShapeDtypeStruct((M, D), jnp.bfloat16),
        grid=(M // tm, F // tf),
        in_specs=[
            pl.BlockSpec((tm, D), lambda i, f: (i, 0)),
            pl.BlockSpec((1, D), lambda i, f: (0, 0)),
            pl.BlockSpec((1, D), lambda i, f: (0, 0)),
            pl.BlockSpec((D, tf), lambda i, f: (0, f)),
            pl.BlockSpec((1, tf), lambda i, f: (0, f)),
            pl.BlockSpec((tf, D), lambda i, f: (f, 0)),
            pl.BlockSpec((1, D), lambda i, f: (0, 0)),
        ],
        out_specs=pl.BlockSpec((tm, D), lambda i, f: (i, 0)),
        scratch_shapes=[pltpu.VMEM((tm, D), jnp.bfloat16),
                        pltpu.VMEM((tm, D), jnp.float32)],
        compiler_params=_cparams(("parallel", "arbitrary"), blocks,
                                 scratch_bytes=tm * D * 6),
    )(x, g, bl, w1, b1, w2, b2)


def _attention_kernel(q_ref, k_ref, v_ref, pad_ref, o_ref,
                      m_sc, l_sc, acc_sc, *, causal, num_heads, tq, tkv, dh):
    """Flash-style attention on lane-dense (tq, D) / (tkv, D) blocks.

    Online softmax per head; live score/prob tensors are (tq, tkv) only.
    Scale is pre-folded into the Q projection.  l/acc are kept lane-dense
    ((tq, D), per-head columns) so the final store is one unmasked (tq, D).
    """
    qi = pl.program_id(1)
    ki = pl.program_id(2)

    @pl.when(ki == 0)
    def _():
        m_sc[...] = jnp.full(m_sc.shape, -1e30, dtype=m_sc.dtype)
        l_sc[...] = jnp.zeros_like(l_sc)
        acc_sc[...] = jnp.zeros_like(acc_sc)

    def update():
        q = q_ref[0]                                   # (tq, D) bf16
        k = k_ref[0]                                   # (tkv, D) bf16
        v = v_ref[0]                                   # (tkv, D) bf16
        allowed = jnp.broadcast_to(pad_ref[0] > 0.0, (tq, tkv))
        if causal:
            q_pos = qi * tq + lax.broadcasted_iota(jnp.int32, (tq, tkv), 0)
            k_pos = ki * tkv + lax.broadcasted_iota(jnp.int32, (tq, tkv), 1)
            allowed = jnp.logical_and(allowed, k_pos <= q_pos)
        neg = jnp.float32(-1e30)
        for h in range(num_heads):
            sl = slice(h * dh, (h + 1) * dh)
            s = lax.dot_general(q[:, sl], k[:, sl],
                                (((1,), (1,)), ((), ())),
                                preferred_element_type=jnp.float32)  # (tq, tkv)
            s = jnp.where(allowed, s, neg)
            m_prev = m_sc[h]                                         # (tq, 1)
            m_new = jnp.maximum(m_prev, jnp.max(s, axis=-1, keepdims=True))
            alpha = jnp.exp(m_prev - m_new)
            p = jnp.exp(s - m_new)
            l_sc[:, sl] = alpha * l_sc[:, sl] + jnp.sum(p, axis=-1, keepdims=True)
            acc_sc[:, sl] = alpha * acc_sc[:, sl] + lax.dot_general(
                p.astype(jnp.bfloat16), v[:, sl],
                (((1,), (0,)), ((), ())), preferred_element_type=jnp.float32)
            m_sc[h] = m_new

    if causal:
        # Skip kv tiles entirely above the diagonal (they contribute nothing).
        @pl.when(ki * tkv <= qi * tq + (tq - 1))
        def _():
            update()
    else:
        update()

    @pl.when(ki == pl.num_programs(2) - 1)
    def _():
        o_ref[0] = (acc_sc[...] * pl.reciprocal(l_sc[...], approx=True)
                    ).astype(o_ref.dtype)


def attention(q, k, v, pad, causal, num_heads):
    """q/k/v: (B, T, D) bf16 (heads concatenated on lane axis, q pre-scaled),
    pad: (B, 1, Tk) float keep-mask. Returns (B, Tq, D) bf16 context."""
    B, Tq, D = q.shape
    Tk = k.shape[1]
    dh = D // num_heads
    tq = _tile(Tq, 128, 8)
    tkv = _tile(Tk, 256, 128)
    blocks = [((1, tq, D), q.dtype), ((1, tkv, D), k.dtype),
              ((1, tkv, D), v.dtype), ((1, 1, tkv), pad.dtype),
              ((1, tq, D), jnp.bfloat16)]
    scratch_bytes = (num_heads * tq + 2 * tq * D) * 4
    return pl.pallas_call(
        functools.partial(_attention_kernel, causal=causal,
                          num_heads=num_heads, tq=tq, tkv=tkv, dh=dh),
        out_shape=jax.ShapeDtypeStruct((B, Tq, D), jnp.bfloat16),
        grid=(B, Tq // tq, Tk // tkv),
        in_specs=[
            pl.BlockSpec((1, tq, D), lambda b, qi, ki: (b, qi, 0)),
            pl.BlockSpec((1, tkv, D), lambda b, qi, ki: (b, ki, 0)),
            pl.BlockSpec((1, tkv, D), lambda b, qi, ki: (b, ki, 0)),
            pl.BlockSpec((1, 1, tkv), lambda b, qi, ki: (b, 0, ki)),
        ],
        out_specs=pl.BlockSpec((1, tq, D), lambda b, qi, ki: (b, qi, 0)),
        scratch_shapes=[
            pltpu.VMEM((num_heads, tq, 1), jnp.float32),   # running max / head
            pltpu.VMEM((tq, D), jnp.float32),              # denom (per-head cols)
            pltpu.VMEM((tq, D), jnp.float32),              # numerator (lane-dense)
        ],
        compiler_params=_cparams(("parallel", "parallel", "arbitrary"),
                                 blocks, scratch_bytes=scratch_bytes),
    )(q, k, v, pad)


# ------------------------ pure-JAX reference blocks -------------------------
# The reference mirrors the kernel math (bf16 activations, f32 accumulation),
# so it validates the Pallas kernels rather than re-deriving higher precision.

def ref_layer_norm(x, g, b):
    xf = x.astype(jnp.float32)
    mu = jnp.mean(xf, axis=-1, keepdims=True)
    var = jnp.mean(jnp.square(xf - mu), axis=-1, keepdims=True)
    return (xf - mu) * lax.rsqrt(var + 1e-6) * g + b


def ref_matmul(x, w, b=None, residual=None, relu=False, out_dtype=jnp.bfloat16):
    y = jnp.dot(x.astype(jnp.bfloat16), w, preferred_element_type=jnp.float32)
    if b is not None:
        y = y + b
    if relu:
        y = jnp.maximum(y, 0.0)
    if residual is not None:
        y = y + residual.astype(jnp.float32)
    return y.astype(out_dtype)


def ref_proj_split(x, w, b, n_out, ln=None):
    if ln is not None:
        xin = ref_layer_norm(x, ln[0], ln[1]).astype(jnp.bfloat16)
    else:
        xin = x.astype(jnp.bfloat16)
    y = jnp.dot(xin, w, preferred_element_type=jnp.float32) + b
    n = y.shape[1] // n_out
    return tuple(y[:, t * n:(t + 1) * n].astype(jnp.bfloat16)
                 for t in range(n_out))


def ref_ln_matmul(x, g, bl, w, out_dtype=jnp.float32):
    xn = ref_layer_norm(x, g, bl).astype(jnp.bfloat16)
    return jnp.dot(xn, w, preferred_element_type=jnp.float32).astype(out_dtype)


def ref_ffn(x, g, bl, w1, b1, w2, b2):
    xn = ref_layer_norm(x, g, bl).astype(jnp.bfloat16)
    h = jnp.maximum(jnp.dot(xn, w1, preferred_element_type=jnp.float32) + b1, 0.0)
    y = jnp.dot(h.astype(jnp.bfloat16), w2,
                preferred_element_type=jnp.float32) + b2
    return (y + x.astype(jnp.float32)).astype(jnp.bfloat16)


def ref_attention(q, k, v, pad, causal, num_heads):
    B, Tq, D = q.shape
    Tk = k.shape[1]
    dh = D // num_heads
    qh = q.reshape(B, Tq, num_heads, dh).transpose(0, 2, 1, 3)
    kh = k.reshape(B, Tk, num_heads, dh).transpose(0, 2, 1, 3)
    vh = v.reshape(B, Tk, num_heads, dh).transpose(0, 2, 1, 3)
    s = jnp.einsum("bhqd,bhkd->bhqk", qh, kh,
                   preferred_element_type=jnp.float32)
    allowed = jnp.broadcast_to(pad[:, :, None, :] > 0.0, (B, 1, Tq, Tk))
    if causal:
        tri = jnp.tril(jnp.ones((Tq, Tk), dtype=bool))
        allowed = jnp.logical_and(allowed, tri[None, None])
    s = jnp.where(allowed, s, -1e30)
    p = jax.nn.softmax(s, axis=-1)
    ctx = jnp.einsum("bhqk,bhkd->bhqd", p.astype(jnp.bfloat16), vh,
                     preferred_element_type=jnp.float32)
    return ctx.transpose(0, 2, 1, 3).reshape(B, Tq, D).astype(jnp.bfloat16)


# --------------------------- decoder forward pass ---------------------------

def sinusoidal_pe(length, dim):
    pos = jnp.arange(length, dtype=jnp.float32)[:, None]
    div = jnp.exp(jnp.arange(0, dim, 2, dtype=jnp.float32)
                  * -(math.log(10000.0) / dim))
    pe = jnp.zeros((length, dim), jnp.float32)
    pe = pe.at[:, 0::2].set(jnp.sin(pos * div))
    pe = pe.at[:, 1::2].set(jnp.cos(pos * div))
    return pe


def make_forward(ops):
    proj = ops["proj_split"]
    mm = ops["matmul"]
    ffn = ops["ffn"]
    attn = ops["attention"]
    ln_mm = ops["ln_matmul"]

    def self_att_block(p, x, trg_pad, num_heads):
        B, T, D = x.shape
        xf = x.reshape(B * T, D)
        # Fused LN + QKV projection, split into q/k/v in-kernel (no HBM slicing).
        q, k, v = proj(xf, p["w_qkv"], p["b_qkv"], 3, ln=(p["ln_g"], p["ln_b"]))
        ctx = attn(q.reshape(B, T, D), k.reshape(B, T, D), v.reshape(B, T, D),
                   trg_pad, True, num_heads)
        # Output projection with the residual add fused into the finalize.
        out = mm(ctx.reshape(B * T, D), p["wo"], p["bo"], residual=xf)
        return out.reshape(B, T, D)

    def cross_att_block(p, h1, mem, src_pad, num_heads):
        B, T, D = h1.shape
        S = mem.shape[1]
        h1f = h1.reshape(B * T, D)
        (q,) = proj(h1f, p["wq"], p["bq"], 1, ln=(p["ln_g"], p["ln_b"]))
        k, v = proj(mem.reshape(B * S, D), p["w_kv"], p["b_kv"], 2, ln=None)
        ctx = attn(q.reshape(B, T, D), k.reshape(B, S, D), v.reshape(B, S, D),
                   src_pad, False, num_heads)
        out = mm(ctx.reshape(B * T, D), p["wo"], p["bo"], residual=h1f)
        return out.reshape(B, T, D)

    def forward(params, embedded_trg, encoder_output, src_mask, trg_mask,
                num_heads):
        B, T, D = embedded_trg.shape
        # emb_pos; emb_dropout / dropout are identity (inference mode).
        x = (embedded_trg + sinusoidal_pe(T, D)[None]).astype(jnp.bfloat16)
        mem = encoder_output.astype(jnp.bfloat16)
        trg_pad = trg_mask.astype(jnp.float32)     # (B,1,T) keep-mask
        src_pad = src_mask.astype(jnp.float32)     # (B,1,S)
        for p in params["layers"]:
            h1 = self_att_block(p["self"], x, trg_pad, num_heads)
            h2 = cross_att_block(p["cross"], h1, mem, src_pad, num_heads)
            f = p["ffn"]
            x = ffn(h2.reshape(B * T, D), f["ln_g"], f["ln_b"],
                    f["w1"], f["b1"], f["w2"], f["b2"]).reshape(B, T, D)
        # Final LN fused with the bias-free output projection.
        logits = ln_mm(x.reshape(B * T, D), params["final_ln_g"],
                       params["final_ln_b"], params["w_out"])
        return logits.reshape(B, T, -1)

    return forward


forward_pallas = make_forward(dict(proj_split=proj_split, matmul=matmul,
                                   ffn=ffn_fused, attention=attention,
                                   ln_matmul=ln_matmul))
forward_ref = make_forward(dict(proj_split=ref_proj_split, matmul=ref_matmul,
                                ffn=ref_ffn, attention=ref_attention,
                                ln_matmul=ref_ln_matmul))


# ------------------------------- parameters ---------------------------------

def init_params(key, num_layers, hidden, ff, vocab):
    def dense(k, din, dout, scale=0.05):
        kw, kb = jax.random.split(k)
        w = (scale * jax.random.normal(kw, (din, dout), jnp.float32)
             ).astype(jnp.bfloat16)
        b = scale * jax.random.normal(kb, (1, dout), jnp.float32)
        return w, b

    def ln(d):
        return jnp.ones((1, d), jnp.float32), jnp.zeros((1, d), jnp.float32)

    keys = jax.random.split(key, num_layers + 1)
    layers = []
    for li in range(num_layers):
        lk = jax.random.split(keys[li], 7)
        w_qkv, b_qkv = dense(lk[0], hidden, 3 * hidden)
        wo_s, bo_s = dense(lk[1], hidden, hidden)
        wq, bq = dense(lk[2], hidden, hidden)
        w_kv, b_kv = dense(lk[3], hidden, 2 * hidden)
        wo_c, bo_c = dense(lk[4], hidden, hidden)
        w1, b1 = dense(lk[5], hidden, ff)
        w2, b2 = dense(lk[6], ff, hidden)
        g1, bl1 = ln(hidden)
        g2, bl2 = ln(hidden)
        g3, bl3 = ln(hidden)
        layers.append({
            "self": {"ln_g": g1, "ln_b": bl1, "w_qkv": w_qkv, "b_qkv": b_qkv,
                     "wo": wo_s, "bo": bo_s},
            "cross": {"ln_g": g2, "ln_b": bl2, "wq": wq, "bq": bq,
                      "w_kv": w_kv, "b_kv": b_kv, "wo": wo_c, "bo": bo_c},
            "ffn": {"ln_g": g3, "ln_b": bl3,
                    "w1": w1, "b1": b1, "w2": w2, "b2": b2},
        })
    w_out, _ = dense(keys[-1], hidden, vocab)   # output_layer has bias=False
    fg, fb = ln(hidden)
    return {"layers": layers, "final_ln_g": fg, "final_ln_b": fb,
            "w_out": w_out}


def fold_attention_scale(params, hidden, num_heads):
    """Fold 1/sqrt(head_dim) into the Q projection weights/biases (parameter
    prep), so no separate q*scale pass over activations is needed."""
    scale = 1.0 / math.sqrt(hidden // num_heads)
    p = jax.tree_util.tree_map(lambda a: a, params)   # rebuild containers
    for layer in p["layers"]:
        s = layer["self"]
        s["w_qkv"] = jnp.concatenate(
            [s["w_qkv"][:, :hidden] * scale, s["w_qkv"][:, hidden:]], axis=1)
        s["b_qkv"] = jnp.concatenate(
            [s["b_qkv"][:, :hidden] * scale, s["b_qkv"][:, hidden:]], axis=1)
        c = layer["cross"]
        c["wq"] = c["wq"] * scale
        c["bq"] = c["bq"] * scale
    return p


# ----------------------------------- main -----------------------------------

if __name__ == "__main__":
    B, T, S = 2, 8, 12
    NUM_LAYERS, NUM_HEADS, HIDDEN, FF, VOCAB = 2, 8, 32, 64, 16

    key = jax.random.PRNGKey(0)
    k_emb, k_mem, k_par = jax.random.split(key, 3)
    embedded_trg = jax.random.normal(k_emb, (B, T, HIDDEN), jnp.float32)
    encoder_output = jax.random.normal(k_mem, (B, S, HIDDEN), jnp.float32)
    src_mask = jnp.ones((B, 1, S), dtype=bool).at[1, 0, 9:].set(False)
    trg_mask = jnp.ones((B, 1, T), dtype=bool).at[1, 0, 6:].set(False)

    params = fold_attention_scale(
        init_params(k_par, NUM_LAYERS, HIDDEN, FF, VOCAB), HIDDEN, NUM_HEADS)

    out = forward_pallas(params, embedded_trg, encoder_output,
                         src_mask, trg_mask, NUM_HEADS)
    out = jax.block_until_ready(out)

    ref = forward_ref(params, embedded_trg, encoder_output,
                      src_mask, trg_mask, NUM_HEADS)
    ref = jax.block_until_ready(ref)

    assert out.shape == (B, T, VOCAB), out.shape
    assert bool(jnp.all(jnp.isfinite(out)))
    max_err = float(jnp.max(jnp.abs(out - ref)))
    assert bool(jnp.allclose(out, ref, atol=3e-2, rtol=3e-2)), max_err
    print("KERNEL_OK")
</pallas_src>

<mosaic_0001>
module attributes {stable_mosaic.version = 11 : i64} {
  func.func @_proj_split_kernel(%arg0: i32, %arg1: memref<16x32xbf16, #tpu.memory_space<vmem>>, %arg2: memref<1x32xf32, #tpu.memory_space<vmem>>, %arg3: memref<1x32xf32, #tpu.memory_space<vmem>>, %arg4: memref<32x96xbf16, #tpu.memory_space<vmem>>, %arg5: memref<1x96xf32, #tpu.memory_space<vmem>>, %arg6: memref<16x32xbf16, #tpu.memory_space<vmem>>, %arg7: memref<16x32xbf16, #tpu.memory_space<vmem>>, %arg8: memref<16x32xbf16, #tpu.memory_space<vmem>>) attributes {dimension_semantics = [#tpu.dimension_semantics<parallel>], iteration_bounds = array<i64: 1>, scalar_prefetch = 0 : i64, scratch_operands = 0 : i64, tpu.core_type = #tpu.core_type<tc>, window_params = [{transform_indices = @transform_0, window_bounds = array<i64: 16, 32>}, {pipeline_mode = #tpu.pipeline_mode<synchronous>, transform_indices = @transform_1, window_bounds = array<i64: 1, 32>}, {pipeline_mode = #tpu.pipeline_mode<synchronous>, transform_indices = @transform_2, window_bounds = array<i64: 1, 32>}, {pipeline_mode = #tpu.pipeline_mode<synchronous>, transform_indices = @transform_3, window_bounds = array<i64: 32, 96>}, {pipeline_mode = #tpu.pipeline_mode<synchronous>, transform_indices = @transform_4, window_bounds = array<i64: 1, 96>}, {transform_indices = @transform_5, window_bounds = array<i64: 16, 32>}, {transform_indices = @transform_6, window_bounds = array<i64: 16, 32>}, {transform_indices = @transform_7, window_bounds = array<i64: 16, 32>}]} {
    %c0 = arith.constant 0 : index
    %c0_0 = arith.constant 0 : index
    %0 = vector.load %arg1[%c0, %c0_0] : memref<16x32xbf16, #tpu.memory_space<vmem>>, vector<16x32xbf16>
    %1 = arith.extf %0 : vector<16x32xbf16> to vector<16x32xf32>
    %cst = arith.constant dense<0.000000e+00> : vector<16xf32>
    %2 = vector.multi_reduction <add>, %1, %cst [1] : vector<16x32xf32> to vector<16xf32>
    %3 = vector.shape_cast %2 : vector<16xf32> to vector<16x1xf32>
    %cst_1 = arith.constant 3.200000e+01 : f32
    %4 = vector.broadcast %cst_1 : f32 to vector<16x1xf32>
    %5 = arith.divf %3, %4 : vector<16x1xf32>
    %6 = vector.broadcast %5 : vector<16x1xf32> to vector<16x32xf32>
    %7 = arith.subf %1, %6 : vector<16x32xf32>
    %8 = arith.mulf %7, %7 : vector<16x32xf32>
    %cst_2 = arith.constant dense<0.000000e+00> : vector<16xf32>
    %9 = vector.multi_reduction <add>, %8, %cst_2 [1] : vector<16x32xf32> to vector<16xf32>
    %10 = vector.shape_cast %9 : vector<16xf32> to vector<16x1xf32>
    %cst_3 = arith.constant 3.200000e+01 : f32
    %11 = vector.broadcast %cst_3 : f32 to vector<16x1xf32>
    %12 = arith.divf %10, %11 : vector<16x1xf32>
    %13 = vector.broadcast %5 : vector<16x1xf32> to vector<16x32xf32>
    %14 = arith.subf %1, %13 : vector<16x32xf32>
    %cst_4 = arith.constant 9.99999997E-7 : f32
    %15 = vector.broadcast %cst_4 : f32 to vector<16x1xf32>
    %16 = arith.addf %12, %15 : vector<16x1xf32>
    %17 = math.rsqrt %16 : vector<16x1xf32>
    %18 = vector.broadcast %17 : vector<16x1xf32> to vector<16x32xf32>
    %19 = arith.mulf %14, %18 : vector<16x32xf32>
    %c0_5 = arith.constant 0 : index
    %c0_6 = arith.constant 0 : index
    %20 = vector.load %arg2[%c0_5, %c0_6] : memref<1x32xf32, #tpu.memory_space<vmem>>, vector<1x32xf32>
    %21 = vector.broadcast %20 : vector<1x32xf32> to vector<16x32xf32>
    %22 = arith.mulf %19, %21 : vector<16x32xf32>
    %c0_7 = arith.constant 0 : index
    %c0_8 = arith.constant 0 : index
    %23 = vector.load %arg3[%c0_7, %c0_8] : memref<1x32xf32, #tpu.memory_space<vmem>>, vector<1x32xf32>
    %24 = vector.broadcast %23 : vector<1x32xf32> to vector<16x32xf32>
    %25 = arith.addf %22, %24 : vector<16x32xf32>
    %26 = arith.truncf %25 : vector<16x32xf32> to vector<16x32xbf16>
    %c0_9 = arith.constant 0 : index
    %c0_10 = arith.constant 0 : index
    %27 = vector.load %arg4[%c0_9, %c0_10] : memref<32x96xbf16, #tpu.memory_space<vmem>>, vector<32x96xbf16>
    %cst_11 = arith.constant dense<0.000000e+00> : vector<16x96xf32>
    %28 = tpu.matmul %26, %27, %cst_11 {dimension_numbers = #tpu.dot_dimension_numbers<[1], [0], [0], [1], [0, 0, 1, 1], [], []>} : vector<16x32xbf16>, vector<32x96xbf16>, vector<16x96xf32> -> vector<16x96xf32>
    %c0_12 = arith.constant 0 : index
    %c0_13 = arith.constant 0 : index
    %29 = vector.load %arg5[%c0_12, %c0_13] : memref<1x96xf32, #tpu.memory_space<vmem>>, vector<1x96xf32>
    %30 = vector.broadcast %29 : vector<1x96xf32> to vector<16x96xf32>
    %31 = arith.addf %28, %30 : vector<16x96xf32>
    %32 = vector.extract_strided_slice %31 {offsets = [0, 0], sizes = [16, 32], strides = [1, 1]} : vector<16x96xf32> to vector<16x32xf32>
    %33 = arith.truncf %32 : vector<16x32xf32> to vector<16x32xbf16>
    %c0_14 = arith.constant 0 : index
    %c0_15 = arith.constant 0 : index
    %34 = vector.load %arg6[%c0_14, %c0_15] : memref<16x32xbf16, #tpu.memory_space<vmem>>, vector<16x32xbf16>
    tpu.vector_store %arg6[%c0_14, %c0_15], %33 {strides = array<i32>} : memref<16x32xbf16, #tpu.memory_space<vmem>>, vector<16x32xbf16>,
    %35 = vector.extract_strided_slice %31 {offsets = [0, 32], sizes = [16, 32], strides = [1, 1]} : vector<16x96xf32> to vector<16x32xf32>
    %36 = arith.truncf %35 : vector<16x32xf32> to vector<16x32xbf16>
    %c0_16 = arith.constant 0 : index
    %c0_17 = arith.constant 0 : index
    %37 = vector.load %arg7[%c0_16, %c0_17] : memref<16x32xbf16, #tpu.memory_space<vmem>>, vector<16x32xbf16>
    tpu.vector_store %arg7[%c0_16, %c0_17], %36 {strides = array<i32>} : memref<16x32xbf16, #tpu.memory_space<vmem>>, vector<16x32xbf16>,
    %38 = vector.extract_strided_slice %31 {offsets = [0, 64], sizes = [16, 32], strides = [1, 1]} : vector<16x96xf32> to vector<16x32xf32>
    %39 = arith.truncf %38 : vector<16x32xf32> to vector<16x32xbf16>
    %c0_18 = arith.constant 0 : index
    %c0_19 = arith.constant 0 : index
    %40 = vector.load %arg8[%c0_18, %c0_19] : memref<16x32xbf16, #tpu.memory_space<vmem>>, vector<16x32xbf16>
    tpu.vector_store %arg8[%c0_18, %c0_19], %39 {strides = array<i32>} : memref<16x32xbf16, #tpu.memory_space<vmem>>, vector<16x32xbf16>,
    return
  }
  func.func @transform_0(%arg0: i32) -> (i32, i32) {
    %c0_i32 = arith.constant 0 : i32
    %c0_i32_0 = arith.constant 0 : i32
    return %arg0, %c0_i32 : i32, i32
  }
  func.func @transform_1(%arg0: i32) -> (i32, i32) {
    %c0_i32 = arith.constant 0 : i32
    %c0_i32_0 = arith.constant 0 : i32
    %c0_i32_1 = arith.constant 0 : i32
    return %c0_i32, %c0_i32_0 : i32, i32
  }
  func.func @transform_2(%arg0: i32) -> (i32, i32) {
    %c0_i32 = arith.constant 0 : i32
    %c0_i32_0 = arith.constant 0 : i32
    %c0_i32_1 = arith.constant 0 : i32
    return %c0_i32, %c0_i32_0 : i32, i32
  }
  func.func @transform_3(%arg0: i32) -> (i32, i32) {
    %c0_i32 = arith.constant 0 : i32
    %c0_i32_0 = arith.constant 0 : i32
    %c0_i32_1 = arith.constant 0 : i32
    return %c0_i32, %c0_i32_0 : i32, i32
  }
  func.func @transform_4(%arg0: i32) -> (i32, i32) {
    %c0_i32 = arith.constant 0 : i32
    %c0_i32_0 = arith.constant 0 : i32
    %c0_i32_1 = arith.constant 0 : i32
    return %c0_i32, %c0_i32_0 : i32, i32
  }
  func.func @transform_5(%arg0: i32) -> (i32, i32) {
    %c0_i32 = arith.constant 0 : i32
    %c0_i32_0 = arith.constant 0 : i32
    return %arg0, %c0_i32 : i32, i32
  }
  func.func @transform_6(%arg0: i32) -> (i32, i32) {
    %c0_i32 = arith.constant 0 : i32
    %c0_i32_0 = arith.constant 0 : i32
    return %arg0, %c0_i32 : i32, i32
  }
  func.func @transform_7(%arg0: i32) -> (i32, i32) {
    %c0_i32 = arith.constant 0 : i32
    %c0_i32_0 = arith.constant 0 : i32
    return %arg0, %c0_i32 : i32, i32
  }
}

</mosaic_0001>

<llo_original>
// kernel: tpu_custom_call.1
$region0: #{tpu_custom_call.1}
  #allocation0 [shape = 'u32[]', space=smem, size = 0x4, offset = 0x4, fixed_abs, tag = 'smem constant byte address 0x4 - core index']
  #allocation1 [shape = 'u32[144,128]{1,0:T(1,128)}', space=vmem, size = 0x12000, scoped, tag = 'internal scratch']
  %s0 = inlined_call_operand.hbm [shape: bf16[16,32], index: 0, kind: input, shape index: {}]
  %s1 = inlined_call_operand.vmem [shape: f32[1,32], index: 1, kind: input, shape index: {}]
  %s2 = inlined_call_operand.vmem [shape: f32[1,32], index: 2, kind: input, shape index: {}]
  %s3 = inlined_call_operand.hbm [shape: bf16[32,96], index: 3, kind: input, shape index: {}]
  %s4 = inlined_call_operand.vmem [shape: f32[1,96], index: 4, kind: input, shape index: {}]
  %s5 = inlined_call_operand.hbm [shape: bf16[16,32], index: 5, kind: output, shape index: {0}]
  %s6 = inlined_call_operand.hbm [shape: bf16[16,32], index: 6, kind: output, shape index: {1}]
  %s7 = inlined_call_operand.hbm [shape: bf16[16,32], index: 7, kind: output, shape index: {2}]
  %8 = xla_tuple %s5, %s6, %s7
  %s9 = sld [smem:[#allocation0]]
  $region54: #{tpu_custom_call.1} parent=0
    _
  %s11 = ssub.s32 1, %s9
  %s12 = scalar_select 0, %s11, %s9
  $region1: #{tpu_custom_call.1} parent=0
    #allocation2 [shape = 'u8[4096]{0}', space=vmem, size = 0x1000, scoped, tag = 'input window, operand 0, single buffered']
    #allocation3 [shape = 's32[1]{0}', space=sflag, size = 0x4, scoped, tag = 'scoped memory for tpu_custom_call.1']
    #allocation4 [shape = 's32[1]{0}', space=sflag, size = 0x4, scoped, tag = 'scoped memory for tpu_custom_call.1']
    #allocation5 [shape = 'u8[8192]{0}', space=vmem, size = 0x2000, scoped, tag = 'input window, operand 3, single buffered']
    #allocation6 [shape = 's32[1]{0}', space=sflag, size = 0x4, scoped, tag = 'scoped memory for tpu_custom_call.1']
    #allocation7 [shape = 'u8[4096]{0}', space=vmem, size = 0x1000, scoped, tag = 'output window, operand 0, single buffered']
    #allocation8 [shape = 'u8[4096]{0}', space=vmem, size = 0x1000, scoped, tag = 'output window, operand 1, single buffered']
    #allocation9 [shape = 's32[1]{0}', space=sflag, size = 0x4, scoped, tag = 'scoped memory for tpu_custom_call.1']
    #allocation10 [shape = 'u8[4096]{0}', space=vmem, size = 0x1000, scoped, tag = 'output window, operand 2, single buffered']
    %13 = vsyncpa [#allocation3], 0
    %14 = vsyncpa [#allocation6], 0
    %15 = vsyncpa [#allocation4], 0
    %16 = vsyncpa [#allocation9], 0
    // Predicated region
    $region2: #{tpu_custom_call.1} parent=1 // pred_check
      _
    $region3: #{tpu_custom_call.1} parent=1 // pred_check_branch
      %18 = sbr.rel (0) target = $region5
    $region4: #{tpu_custom_call.1} parent=1 // pred_region
      %s20 = ssub.s32 128, 128
      %21 = vsyncadd [#allocation3], %s20
      %s22 = sshll.u32 [#allocation2], 4
      %s23 = int_to_ptr.vmem [resolvable:$true] %s22
      %28 = dma.hbm_to_vmem [thread:$0]  %s0, 128, %s23, [#allocation3], 64, 64, 4
    $region5: #{tpu_custom_call.1} parent=1 // pred_fallthru
      _
    // Predicated region
    $region6: #{tpu_custom_call.1} parent=1 // pred_check
      _
    $region7: #{tpu_custom_call.1} parent=1 // pred_check_branch
      %30 = sbr.rel (0) target = $region9
    $region8: #{tpu_custom_call.1} parent=1 // pred_region
      _
    $region9: #{tpu_custom_call.1} parent=1 // pred_fallthru
      _
    // Predicated region
    $region10: #{tpu_custom_call.1} parent=1 // pred_check
      _
    $region11: #{tpu_custom_call.1} parent=1 // pred_check_branch
      %32 = sbr.rel (0) target = $region13
    $region12: #{tpu_custom_call.1} parent=1 // pred_region
      _
    $region13: #{tpu_custom_call.1} parent=1 // pred_fallthru
      _
    // Predicated region
    $region14: #{tpu_custom_call.1} parent=1 // pred_check
      _
    $region15: #{tpu_custom_call.1} parent=1 // pred_check_branch
      %34 = sbr.rel (0) target = $region17
    $region16: #{tpu_custom_call.1} parent=1 // pred_region
      %s36 = ssub.s32 256, 256
      %37 = vsyncadd [#allocation6], %s36
      %s38 = sshll.u32 [#allocation5], 4
      %s39 = int_to_ptr.vmem [resolvable:$true] %s38
      %44 = dma.hbm_to_vmem [thread:$0]  %s3, 256, %s39, [#allocation6], 64, 64, 4
    $region17: #{tpu_custom_call.1} parent=1 // pred_fallthru
      _
    // Predicated region
    $region18: #{tpu_custom_call.1} parent=1 // pred_check
      _
    $region19: #{tpu_custom_call.1} parent=1 // pred_check_branch
      %46 = sbr.rel (0) target = $region21
    $region20: #{tpu_custom_call.1} parent=1 // pred_region
      _
    $region21: #{tpu_custom_call.1} parent=1 // pred_fallthru
      _
    // Predicated region
    $region22: #{tpu_custom_call.1} parent=1 // pred_check
      _
    $region23: #{tpu_custom_call.1} parent=1 // pred_check_branch
      %48 = sbr.rel (0) target = $region25
    $region24: #{tpu_custom_call.1} parent=1 // pred_region
      %49 = dma.done [#allocation3], 128
    $region25: #{tpu_custom_call.1} parent=1 // pred_fallthru
      _
    // Predicated region
    $region26: #{tpu_custom_call.1} parent=1 // pred_check
      _
    $region27: #{tpu_custom_call.1} parent=1 // pred_check_branch
      %51 = sbr.rel (0) target = $region29
    $region28: #{tpu_custom_call.1} parent=1 // pred_region
      %52 = dma.done [#allocation6], 256
    $region29: #{tpu_custom_call.1} parent=1 // pred_fallthru
      _
    %v54 = vld [vmem:[#allocation2] sm:$0xf]
    %v55 = vld [vmem:[#allocation2 + $0x4] sm:$0xf]
    %v56 = vunpack.c.l.bf16 %v54
    %v57 = vunpack.c.l.bf16 %v55
    %vm58 = vcmask 261120
    %v59 = vsel %vm58, %v56, 0.0
    %60 = vadd.xlane.f32.xlu0 %v59
    %v61 = vpop.xlane.xlu0 %60
    %v62 = vsel %vm58, %v57, 0.0
    %63 = vadd.xlane.f32.xlu0 %v62
    %v64 = vpop.xlane.xlu0 %63
    %v65 = vrcp.pop 32.0
    %v66 = vmul.f32 %v61, %v65
    %v67 = vmul.f32 %v64, %v65
    %v68 = vsub.f32 %v56, %v66
    %v69 = vsub.f32 %v57, %v67
    %v70 = vmul.f32 %v68, %v68
    %v71 = vmul.f32 %v69, %v69
    %v72 = vsel %vm58, %v70, 0.0
    %73 = vadd.xlane.f32.xlu0 %v72
    %v74 = vpop.xlane.xlu0 %73
    %v75 = vsel %vm58, %v71, 0.0
    %76 = vadd.xlane.f32.xlu0 %v75
    %v77 = vpop.xlane.xlu0 %76
    %v78 = vmul.f32 %v74, %v65
    %v79 = vmul.f32 %v77, %v65
    %v80 = vadd.f32 %v78, 1e-06
    %v81 = vadd.f32 %v79, 1e-06
    %v82 = vrsqrt.pop %v80
    %v83 = vrsqrt.pop %v81
    %v84 = vmul.f32 %v68, %v82
    %v85 = vmul.f32 %v69, %v83
    %v86 = vld [vmem:[%s1] sm:$0x1]
    %v88 = vlaneseq
    %v89 = vshrl.u32 %v88, 7
    %v90 = vsub.s32 0, %v89
    %v91 = vrot.slane %v86, %v90
    %v93 = vmul.f32 %v84, %v91
    %v94 = vmul.f32 %v85, %v91
    %v95 = vld [vmem:[%s2] sm:$0x1]
    %v97 = vlaneseq
    %v98 = vshrl.u32 %v97, 7
    %v99 = vsub.s32 0, %v98
    %v100 = vrot.slane %v95, %v99
    %v102 = vadd.f32 %v93, %v100
    %v103 = vadd.f32 %v94, %v100
    %v104 = vpack.c.bf16 %v103, %v102
    %v105 = vld [vmem:[#allocation5] sm:$0xf]
    %v106 = vld [vmem:[#allocation5 + $0x4] sm:$0xf]
    %v107 = vld [vmem:[#allocation5 + $0x8] sm:$0xf]
    %v108 = vld [vmem:[#allocation5 + $0xc] sm:$0xf]
    %v109 = vld [vmem:[%s4] sm:$0x1]
    %v111 = vlaneseq
    %v112 = vshrl.u32 %v111, 7
    %v113 = vsub.s32 0, %v112
    %v114 = vrot.slane %v109, %v113
    %v120 = vunpack.c.l.b16 %v105
    %v121 = vunpack.c.l.b16 %v106
    %v122 = vunpack.c.l.b16 %v107
    %v123 = vunpack.c.l.b16 %v108
    %v124 = vpack.c.b16 %v121, %v120
    %v125 = vpack.c.b16 %v123, %v122
    %v129 = vsel %vm58, %v104, 0
    %131 = vmatprep.subr.bf16.mxu0 0
    %132 = vmatpush1.bf16.msra.mxu0 %v124
    %133 = vmatprep.subr.bf16.mxu0 0
    %134 = vmatpush1.bf16.msra.mxu0 %v125
    %135 = vmatprep.subr.bf16.mxu0 0
    %136 = vmatpush1.bf16.msra.mxu0 0
    %137 = vmatprep.subr.bf16.mxu0 0
    %138 = vmatpush1.bf16.msra.mxu0 0
    %139 = vmatprep.subr.bf16.mxu0 0
    %140 = vmatpush1.bf16.msra.mxu0 0
    %141 = vmatprep.subr.bf16.mxu0 0
    %142 = vmatpush1.bf16.msra.mxu0 0
    %143 = vmatprep.subr.bf16.mxu0 0
    %144 = vmatpush1.bf16.msra.mxu0 0
    %145 = vmatprep.subr.bf16.mxu0 0
    %146 = vmatpush1.bf16.msra.mxu0 0
    %147 = vmatprep.subr.bf16.mxu0 0
    %148 = vmatpush1.bf16.msra.mxu0 0
    %149 = vmatprep.subr.bf16.mxu0 0
    %150 = vmatpush1.bf16.msra.mxu0 0
    %151 = vmatprep.subr.bf16.mxu0 0
    %152 = vmatpush1.bf16.msra.mxu0 0
    %153 = vmatprep.subr.bf16.mxu0 0
    %154 = vmatpush1.bf16.msra.mxu0 0
    %155 = vmatprep.subr.bf16.mxu0 0
    %156 = vmatpush1.bf16.msra.mxu0 0
    %157 = vmatprep.subr.bf16.mxu0 0
    %158 = vmatpush1.bf16.msra.mxu0 0
    %159 = vmatprep.subr.bf16.mxu0 0
    %160 = vmatpush1.bf16.msra.mxu0 0
    %161 = vmatprep.subr.bf16.mxu0 0
    %162 = vmatpush1.bf16.msra.mxu0 0
    %163 = vmatprep.mubr.bf16.mxu0 0
    %164 = vmatmul.mubr.bf16.gmra.mrb[0].mxu0 %v129
    %v165 = vpop.f32.mrb[0].mxu0
    %v166 = vadd.f32 %v114, %v165
    %v167 = vpop.f32.mrb[0].mxu0
    %v168 = vpop.f32.mrb[0].mxu0
    %v169 = vadd.f32 %v114, %v168
    %v170 = vpop.f32.mrb[0].mxu0
    %171 = vdwg.mxu0
    %v172 = vpack.c.bf16 %v169, %v166
    %v174 = vunpack.c.l.b16 %v172
    %v175 = vunpack.c.h.b16 %v172
    %v176 = vpack.c.b16 %v174, %v174
    %v177 = vpack.c.b16 %v175, %v175
    %vm180 = vcmask 257024
    %181 = vst.msk [vmem:[#allocation7] sm:$0xf] %vm180, %v176
    %182 = vst.msk [vmem:[#allocation7 + $0x4] sm:$0xf] %vm180, %v177
    %183 = vrot.lane.b32.xlu0 %v176, 96
    %v184 = vpop.permute.xlu0 %183
    %185 = vrot.lane.b32.xlu0 %v177, 96
    %v186 = vpop.permute.xlu0 %185
    %189 = vst.msk [vmem:[#allocation8] sm:$0xf] %vm180, %v184
    %190 = vst.msk [vmem:[#allocation8 + $0x4] sm:$0xf] %vm180, %v186
    %191 = vrot.lane.b32.xlu0 %v176, 64
    %v192 = vpop.permute.xlu0 %191
    %193 = vrot.lane.b32.xlu0 %v177, 64
    %v194 = vpop.permute.xlu0 %193
    %197 = vst.msk [vmem:[#allocation10] sm:$0xf] %vm180, %v192
    %198 = vst.msk [vmem:[#allocation10 + $0x4] sm:$0xf] %vm180, %v194
    // Predicated region
    $region30: #{tpu_custom_call.1} parent=1 // pred_check
      _
    $region31: #{tpu_custom_call.1} parent=1 // pred_check_branch
      %200 = sbr.rel (0) target = $region33
    $region32: #{tpu_custom_call.1} parent=1 // pred_region
      %s202 = ssub.s32 128, 128
      %203 = vsyncadd [#allocation4], %s202
      %s204 = sshll.u32 [#allocation7], 4
      %s205 = int_to_ptr.vmem [resolvable:$true] %s204
      %210 = dma.vmem_to_hbm [thread:$0]  %s205, 128, %s5, [#allocation4], 64, 64, 4
    $region33: #{tpu_custom_call.1} parent=1 // pred_fallthru
      _
    // Predicated region
    $region34: #{tpu_custom_call.1} parent=1 // pred_check
      _
    $region35: #{tpu_custom_call.1} parent=1 // pred_check_branch
      %212 = sbr.rel (0) target = $region37
    $region36: #{tpu_custom_call.1} parent=1 // pred_region
      %s214 = ssub.s32 128, 128
      %215 = vsyncadd [#allocation9], %s214
      %s216 = sshll.u32 [#allocation8], 4
      %s217 = int_to_ptr.vmem [resolvable:$true] %s216
      %222 = dma.vmem_to_hbm [thread:$0]  %s217, 128, %s6, [#allocation9], 64, 64, 4
    $region37: #{tpu_custom_call.1} parent=1 // pred_fallthru
      _
    // Predicated region
    $region38: #{tpu_custom_call.1} parent=1 // pred_check
      _
    $region39: #{tpu_custom_call.1} parent=1 // pred_check_branch
      %224 = sbr.rel (0) target = $region41
    $region40: #{tpu_custom_call.1} parent=1 // pred_region
      %s226 = ssub.s32 128, 128
      %227 = vsyncadd [#allocation9], %s226
      %s228 = sshll.u32 [#allocation10], 4
      %s229 = int_to_ptr.vmem [resolvable:$true] %s228
      %234 = dma.vmem_to_hbm [thread:$0]  %s229, 128, %s7, [#allocation9], 64, 64, 4
    $region41: #{tpu_custom_call.1} parent=1 // pred_fallthru
      _
    // Predicated region
    $region42: #{tpu_custom_call.1} parent=1 // pred_check
      _
    $region43: #{tpu_custom_call.1} parent=1 // pred_check_branch
      %236 = sbr.rel (0) target = $region45
    $region44: #{tpu_custom_call.1} parent=1 // pred_region
      %237 = dma.done [#allocation4], 128
    $region45: #{tpu_custom_call.1} parent=1 // pred_fallthru
      _
    // Predicated region
    $region46: #{tpu_custom_call.1} parent=1 // pred_check
      _
    $region47: #{tpu_custom_call.1} parent=1 // pred_check_branch
      %239 = sbr.rel (0) target = $region49
    $region48: #{tpu_custom_call.1} parent=1 // pred_region
      %240 = dma.done [#allocation9], 128
    $region49: #{tpu_custom_call.1} parent=1 // pred_fallthru
      _
    // Predicated region
    $region50: #{tpu_custom_call.1} parent=1 // pred_check
      _
    $region51: #{tpu_custom_call.1} parent=1 // pred_check_branch
      %242 = sbr.rel (0) target = $region53
    $region52: #{tpu_custom_call.1} parent=1 // pred_region
      %243 = dma.done [#allocation9], 128
    $region53: #{tpu_custom_call.1} parent=1 // pred_fallthru
      _
    %244 = vsyncpa [#allocation3], 1
    %245 = vsyncpa [#allocation6], 1
    %246 = vsyncpa [#allocation4], 1
    %247 = vsyncpa [#allocation9], 1

</llo_original>
